<compile_context>
chip_gen: v7x
topology: tpu7x:2x2x1
jax: 0.10.0
libtpu: 0.0.40
codegen_flags: <defaults>
</compile_context>

<pallas_src>
import functools

import jax
import jax.numpy as jnp
from jax import lax
from jax.experimental import pallas as pl
from jax.experimental.pallas import tpu as pltpu


# ----------------------------------------------------------------------------
# Shared geometry: flat padded-plane layout used by kernel and wrapper.
# ----------------------------------------------------------------------------
def _geom(nt, h, w):
    hp, wp = h + 2, w + 2          # conv2D_12 padding = 1
    p = hp * wp                    # flat padded positions per image
    m2 = nt * p                    # rows where conv2 / dense mask are evaluated
    ex = wp + 1                    # largest 2x2 tap offset in the flat layout
    m1 = m2 + ex                   # rows where conv1 is evaluated (covers conv2 taps)
    mx = m1 + ex                   # rows of the zero-padded flat input scratch
    offs = (0, 1, wp, wp + 1)      # flat row offsets of the 2x2 taps
    return hp, wp, p, m2, m1, mx, offs


# ----------------------------------------------------------------------------
# Fused kernel: pad -> conv2D_12(+ReLU) -> conv2D_13(+ReLU) -> flatten -> dense_1
# One grid step == one batch tile of `nt` images.
# ----------------------------------------------------------------------------
def _bloc_out_kernel(x_ref, w1_ref, b1_ref, w2_ref, b2_ref, wd_ref, bd_ref,
                     o_ref, xs_ref, a1_ref, *, nt, h, w):
    # x_ref : (nt, H, W, Cin)      unpadded NHWC batch tile
    # w1_ref: (4*Cin, C1)          conv2D_12 weights, tap-major packing
    # b1_ref: (1, C1)
    # w2_ref: (4*C1, C2)           conv2D_13 weights, tap-major packing
    # b2_ref: (1, C2)
    # wd_ref: (Hp*Wp, C2)          dense_1 weights on the padded flat plane
    #                              (zeros at pad / wrap-garbage positions)
    # bd_ref: (1, 1) in SMEM       dense_1 bias (scalar)
    # o_ref : (1, nt, 1)           one output row per image of the tile
    # xs_ref: (mx, Cin)  scratch   zero-padded, flattened input
    # a1_ref: (m1, C1)   scratch   conv1 activations on the flat plane
    _, wp, p, m2, m1, _, offs = _geom(nt, h, w)

    # ---- (1) in-kernel zero padding: scatter the image rows into a zeroed
    #          flat (position, Cin) scratch.  nt*h tiny static stores.
    xs_ref[...] = jnp.zeros_like(xs_ref)
    for b in range(nt):
        for r in range(h):
            dst = b * p + (r + 1) * wp + 1
            xs_ref[dst:dst + w, :] = x_ref[b, r, :, :]

    # ---- (2) conv2D_12 + ReLU as ONE MXU matmul over all images/rows/taps.
    #          im2col = lane-concat of the four tap-shifted flat views.
    lhs1 = jnp.concatenate([xs_ref[off:off + m1, :] for off in offs], axis=1)
    a1_ref[...] = jnp.maximum(
        jnp.dot(lhs1, w1_ref[...], preferred_element_type=jnp.float32)
        + b1_ref[...], 0.0)

    # ---- (3) conv2D_13 + ReLU as ONE MXU matmul (same trick on the conv1 map).
    lhs2 = jnp.concatenate([a1_ref[off:off + m2, :] for off in offs], axis=1)
    a2 = jnp.maximum(
        jnp.dot(lhs2, w2_ref[...], preferred_element_type=jnp.float32)
        + b2_ref[...], 0.0)

    # ---- (4) dense_1 as one whole-block contraction.  wd already encodes the
    #          NCHW-flatten ordering and zeros out pad/garbage positions; `sel`
    #          groups flat rows by image (built with 2-D iota, no division).
    wdt = wd_ref[...]
    if nt > 1:
        wdt = jnp.concatenate([wdt] * nt, axis=0)          # (m2, C2)
    b_mat = a2 * wdt                                        # (m2, C2)
    row = lax.broadcasted_iota(jnp.int32, (nt, m2), 1)
    img = lax.broadcasted_iota(jnp.int32, (nt, m2), 0) * p
    sel = ((row >= img) & (row < img + p)).astype(jnp.float32)   # (nt, m2)
    t = jnp.dot(sel, b_mat, preferred_element_type=jnp.float32)  # (nt, C2)
    out = jnp.sum(t, axis=1, keepdims=True) + bd_ref[0, 0]       # (nt, 1)

    # Single batched store per grid step (instead of one scalar store / image).
    o_ref[0] = out.astype(o_ref.dtype)


# ----------------------------------------------------------------------------
# One-time parameter preparation (hoisted out of the per-call jitted path).
# ----------------------------------------------------------------------------
def prepare_params(params, h, w):
    c1, cin, kh, kw = params["conv12_w"].shape      # OIHW
    c2 = params["conv13_w"].shape[0]
    assert (kh, kw) == (2, 2)
    hp, wp = h + 2, w + 2
    ho2, wo2 = h, w                                  # spatial size after both convs

    # Conv weights OIHW -> (kh*kw*Cin, Cout), tap-major then input channel,
    # matching the lane order of the in-kernel im2col concatenation.
    w1 = jnp.transpose(params["conv12_w"], (2, 3, 1, 0)).reshape(4 * cin, c1)
    w2 = jnp.transpose(params["conv13_w"], (2, 3, 1, 0)).reshape(4 * c1, c2)
    b1 = params["conv12_b"].reshape(1, c1).astype(jnp.float32)
    b2 = params["conv13_b"].reshape(1, c2).astype(jnp.float32)

    # Dense weight (1, C2*Ho2*Wo2), indexed in NCHW-flatten order, is scattered
    # onto the padded flat plane (Hp*Wp, C2); pad / wrap-garbage positions = 0.
    assert params["dense_w"].shape == (1, c2 * ho2 * wo2)
    wd_hwc = jnp.transpose(params["dense_w"].reshape(c2, ho2, wo2), (1, 2, 0))
    wd_full = jnp.zeros((hp, wp, c2), jnp.float32).at[:ho2, :wo2, :].set(wd_hwc)
    wd = wd_full.reshape(hp * wp, c2)
    bd = params["dense_b"].reshape(1, 1).astype(jnp.float32)

    return {"w1": w1.astype(jnp.float32), "b1": b1,
            "w2": w2.astype(jnp.float32), "b2": b2,
            "wd": wd, "bd": bd}


# ----------------------------------------------------------------------------
# Wrapper: NCHW input + prepared params -> single fused pallas_call.
# ----------------------------------------------------------------------------
def bloc_out_no_bn_forward(prepared, x_nchw, *, max_blocks=2):
    """x_nchw: (N, Cin, H, W) f32 -> (N, 1), matching the PyTorch forward."""
    n, cin, h, w = x_nchw.shape
    c1 = prepared["w1"].shape[1]
    c2 = prepared["w2"].shape[1]

    # Grid: at most 2 "parallel" blocks -> one per TensorCore on v7x; on the
    # single-TC v5e/v6e this is <= 2 cheap sequential steps.  All images of a
    # block are merged into the matmul M dimension inside the kernel.
    g = max(1, min(max_blocks, n))
    nt = -(-n // g)                          # images per block (cdiv)
    n_pad = g * nt
    _, _, p, _, m1, mx, _ = _geom(nt, h, w)

    # Only per-call XLA op left: NCHW -> NHWC transpose (padding is done
    # in-kernel; weight re-layouts were hoisted to prepare_params).
    x = jnp.transpose(x_nchw, (0, 2, 3, 1)).astype(jnp.float32)
    if n_pad != n:                           # only for odd batch sizes
        x = jnp.pad(x, ((0, n_pad - n), (0, 0), (0, 0), (0, 0)))

    kernel = functools.partial(_bloc_out_kernel, nt=nt, h=h, w=w)
    out = pl.pallas_call(
        kernel,
        out_shape=jax.ShapeDtypeStruct((g, nt, 1), jnp.float32),
        grid=(g,),
        in_specs=[
            pl.BlockSpec((nt, h, w, cin), lambda b: (b, 0, 0, 0)),  # batch tile
            pl.BlockSpec((4 * cin, c1), lambda b: (0, 0)),   # weights stay
            pl.BlockSpec((1, c1), lambda b: (0, 0)),         # VMEM-resident
            pl.BlockSpec((4 * c1, c2), lambda b: (0, 0)),    # across grid steps
            pl.BlockSpec((1, c2), lambda b: (0, 0)),
            pl.BlockSpec((p, c2), lambda b: (0, 0)),
            pl.BlockSpec(memory_space=pltpu.MemorySpace.SMEM),  # scalar bias
        ],
        out_specs=pl.BlockSpec((1, nt, 1), lambda b: (b, 0, 0)),
        scratch_shapes=[
            pltpu.VMEM((mx, cin), jnp.float32),   # zero-padded flat input
            pltpu.VMEM((m1, c1), jnp.float32),    # conv1 activations
        ],
        compiler_params=pltpu.CompilerParams(
            dimension_semantics=("parallel",)),
    )(x, prepared["w1"], prepared["b1"], prepared["w2"], prepared["b2"],
      prepared["wd"], prepared["bd"])
    return out.reshape(g * nt, 1)[:n]


# ----------------------------------------------------------------------------
# Deterministic synthetic params in native PyTorch layouts
# (Conv2d: OIHW weight + bias, Linear: (out_features, in_features) weight).
# ----------------------------------------------------------------------------
def init_params(key, num_filter_ens, num_filter_ens_2, out_features_in):
    cin = num_filter_ens[2]
    c1 = num_filter_ens_2[0]
    ks = 2
    k1, k2, k3, k4, k5, k6 = jax.random.split(key, 6)

    def u(k, shape, fan_in):
        bound = 1.0 / (fan_in ** 0.5)
        return jax.random.uniform(k, shape, jnp.float32, -bound, bound)

    return {
        "conv12_w": u(k1, (c1, cin, ks, ks), cin * ks * ks),
        "conv12_b": u(k2, (c1,), cin * ks * ks),
        "conv13_w": u(k3, (c1, c1, ks, ks), c1 * ks * ks),
        "conv13_b": u(k4, (c1,), c1 * ks * ks),
        "dense_w": u(k5, (1, out_features_in), out_features_in),
        "dense_b": u(k6, (1,), out_features_in),
    }


# ----------------------------------------------------------------------------
# Plain-JAX reference (mirrors the PyTorch module) for the correctness check.
# ----------------------------------------------------------------------------
def reference_forward(params, x_nchw):
    dn = ("NCHW", "OIHW", "NCHW")
    y = lax.conv_general_dilated(x_nchw, params["conv12_w"], (1, 1), ((1, 1), (1, 1)),
                                 dimension_numbers=dn, precision=lax.Precision.HIGHEST)
    y = jax.nn.relu(y + params["conv12_b"].reshape(1, -1, 1, 1))
    y = lax.conv_general_dilated(y, params["conv13_w"], (1, 1), ((0, 0), (0, 0)),
                                 dimension_numbers=dn, precision=lax.Precision.HIGHEST)
    y = jax.nn.relu(y + params["conv13_b"].reshape(1, -1, 1, 1))
    y = y.reshape(y.shape[0], -1)                      # flatten(1) in NCHW order
    return (jnp.dot(y, params["dense_w"].T, precision=lax.Precision.HIGHEST)
            + params["dense_b"])


if __name__ == "__main__":
    key = jax.random.PRNGKey(0)
    kp, kx = jax.random.split(key)

    # Small config consistent with the module (it sits at the tail of a CNN,
    # so the input is a small feature map).
    num_filter_ens = (8, 8, 8)       # only [2] (block input channels) is used
    num_filter_ens_2 = (16,)
    N, H, W = 2, 4, 4
    cin = num_filter_ens[2]
    # conv2D_12 (k=2,s=1,p=1): 4x4 -> 5x5 ; conv2D_13 (k=2,s=1,p=0): 5x5 -> 4x4
    out_features_in = num_filter_ens_2[0] * H * W      # = 256 = the `out` arg

    params = init_params(kp, num_filter_ens, num_filter_ens_2, out_features_in)
    x = jax.random.normal(kx, (N, cin, H, W), jnp.float32)   # NCHW, like PyTorch

    # Weight re-layouts hoisted out of the per-call path (done once).
    prepared = jax.tree_util.tree_map(jax.block_until_ready,
                                      prepare_params(params, H, W))

    fwd = jax.jit(bloc_out_no_bn_forward)
    y = jax.block_until_ready(fwd(prepared, x))
    assert y.shape == (N, 1), y.shape

    # Kernel dots use default MXU precision (reference uses HIGHEST), hence the
    # loose tolerance; pass precision=HIGHEST in the kernel dots if tighter
    # agreement is ever required.
    y_ref = reference_forward(params, x)
    assert jnp.allclose(y, y_ref, atol=2e-3, rtol=2e-2), (y, y_ref)
    print("KERNEL_OK")
</pallas_src>

<mosaic_0001>
module attributes {stable_mosaic.version = 11 : i64} {
  func.func @_bloc_out_kernel(%arg0: i32, %arg1: memref<1x4x4x8xf32, #tpu.memory_space<vmem>>, %arg2: memref<32x16xf32, #tpu.memory_space<vmem>>, %arg3: memref<1x16xf32, #tpu.memory_space<vmem>>, %arg4: memref<64x16xf32, #tpu.memory_space<vmem>>, %arg5: memref<1x16xf32, #tpu.memory_space<vmem>>, %arg6: memref<36x16xf32, #tpu.memory_space<vmem>>, %arg7: memref<1x1xf32, #tpu.memory_space<smem>>, %arg8: memref<1x1x1xf32, #tpu.memory_space<vmem>>, %arg9: memref<50x8xf32, #tpu.memory_space<vmem>>, %arg10: memref<43x16xf32, #tpu.memory_space<vmem>>) attributes {dimension_semantics = [#tpu.dimension_semantics<parallel>], iteration_bounds = array<i64: 2>, scalar_prefetch = 0 : i64, scratch_operands = 2 : i64, tpu.core_type = #tpu.core_type<tc>, window_params = [{transform_indices = @transform_0, window_bounds = array<i64: 1, 4, 4, 8>}, {pipeline_mode = #tpu.pipeline_mode<synchronous>, transform_indices = @transform_1, window_bounds = array<i64: 32, 16>}, {pipeline_mode = #tpu.pipeline_mode<synchronous>, transform_indices = @transform_2, window_bounds = array<i64: 1, 16>}, {pipeline_mode = #tpu.pipeline_mode<synchronous>, transform_indices = @transform_3, window_bounds = array<i64: 64, 16>}, {pipeline_mode = #tpu.pipeline_mode<synchronous>, transform_indices = @transform_4, window_bounds = array<i64: 1, 16>}, {pipeline_mode = #tpu.pipeline_mode<synchronous>, transform_indices = @transform_5, window_bounds = array<i64: 36, 16>}, {transform_indices = @transform_6, window_bounds = array<i64: 1, 1>}, {transform_indices = @transform_7, window_bounds = array<i64: 1, 1, 1>}]} {
    %cst = arith.constant 0.000000e+00 : f32
    %0 = vector.broadcast %cst : f32 to vector<50x8xf32>
    %c0 = arith.constant 0 : index
    %c0_0 = arith.constant 0 : index
    %1 = vector.load %arg9[%c0, %c0_0] : memref<50x8xf32, #tpu.memory_space<vmem>>, vector<50x8xf32>
    tpu.vector_store %arg9[%c0, %c0_0], %0 {strides = array<i32>} : memref<50x8xf32, #tpu.memory_space<vmem>>, vector<50x8xf32>,
    %c0_1 = arith.constant 0 : index
    %c0_2 = arith.constant 0 : index
    %c0_3 = arith.constant 0 : index
    %c0_4 = arith.constant 0 : index
    %2 = vector.load %arg1[%c0_1, %c0_2, %c0_3, %c0_4] : memref<1x4x4x8xf32, #tpu.memory_space<vmem>>, vector<1x1x4x8xf32>
    %3 = vector.shape_cast %2 : vector<1x1x4x8xf32> to vector<4x8xf32>
    %c7 = arith.constant 7 : index
    %c0_5 = arith.constant 0 : index
    %4 = vector.load %arg9[%c7, %c0_5] : memref<50x8xf32, #tpu.memory_space<vmem>>, vector<4x8xf32>
    tpu.vector_store %arg9[%c7, %c0_5], %3 {strides = array<i32>} : memref<50x8xf32, #tpu.memory_space<vmem>>, vector<4x8xf32>,
    %c0_6 = arith.constant 0 : index
    %c1 = arith.constant 1 : index
    %c0_7 = arith.constant 0 : index
    %c0_8 = arith.constant 0 : index
    %5 = vector.load %arg1[%c0_6, %c1, %c0_7, %c0_8] : memref<1x4x4x8xf32, #tpu.memory_space<vmem>>, vector<1x1x4x8xf32>
    %6 = vector.shape_cast %5 : vector<1x1x4x8xf32> to vector<4x8xf32>
    %c13 = arith.constant 13 : index
    %c0_9 = arith.constant 0 : index
    %7 = vector.load %arg9[%c13, %c0_9] : memref<50x8xf32, #tpu.memory_space<vmem>>, vector<4x8xf32>
    tpu.vector_store %arg9[%c13, %c0_9], %6 {strides = array<i32>} : memref<50x8xf32, #tpu.memory_space<vmem>>, vector<4x8xf32>,
    %c0_10 = arith.constant 0 : index
    %c2 = arith.constant 2 : index
    %c0_11 = arith.constant 0 : index
    %c0_12 = arith.constant 0 : index
    %8 = vector.load %arg1[%c0_10, %c2, %c0_11, %c0_12] : memref<1x4x4x8xf32, #tpu.memory_space<vmem>>, vector<1x1x4x8xf32>
    %9 = vector.shape_cast %8 : vector<1x1x4x8xf32> to vector<4x8xf32>
    %c19 = arith.constant 19 : index
    %c0_13 = arith.constant 0 : index
    %10 = vector.load %arg9[%c19, %c0_13] : memref<50x8xf32, #tpu.memory_space<vmem>>, vector<4x8xf32>
    tpu.vector_store %arg9[%c19, %c0_13], %9 {strides = array<i32>} : memref<50x8xf32, #tpu.memory_space<vmem>>, vector<4x8xf32>,
    %c0_14 = arith.constant 0 : index
    %c3 = arith.constant 3 : index
    %c0_15 = arith.constant 0 : index
    %c0_16 = arith.constant 0 : index
    %11 = vector.load %arg1[%c0_14, %c3, %c0_15, %c0_16] : memref<1x4x4x8xf32, #tpu.memory_space<vmem>>, vector<1x1x4x8xf32>
    %12 = vector.shape_cast %11 : vector<1x1x4x8xf32> to vector<4x8xf32>
    %c25 = arith.constant 25 : index
    %c0_17 = arith.constant 0 : index
    %13 = vector.load %arg9[%c25, %c0_17] : memref<50x8xf32, #tpu.memory_space<vmem>>, vector<4x8xf32>
    tpu.vector_store %arg9[%c25, %c0_17], %12 {strides = array<i32>} : memref<50x8xf32, #tpu.memory_space<vmem>>, vector<4x8xf32>,
    %c0_18 = arith.constant 0 : index
    %c0_19 = arith.constant 0 : index
    %14 = vector.load %arg9[%c0_18, %c0_19] : memref<50x8xf32, #tpu.memory_space<vmem>>, vector<43x8xf32>
    %c1_20 = arith.constant 1 : index
    %c0_21 = arith.constant 0 : index
    %15 = vector.load %arg9[%c1_20, %c0_21] : memref<50x8xf32, #tpu.memory_space<vmem>>, vector<43x8xf32>
    %c6 = arith.constant 6 : index
    %c0_22 = arith.constant 0 : index
    %16 = vector.load %arg9[%c6, %c0_22] : memref<50x8xf32, #tpu.memory_space<vmem>>, vector<43x8xf32>
    %c7_23 = arith.constant 7 : index
    %c0_24 = arith.constant 0 : index
    %17 = vector.load %arg9[%c7_23, %c0_24] : memref<50x8xf32, #tpu.memory_space<vmem>>, vector<43x8xf32>
    %18 = tpu.concatenate %14, %15, %16, %17 in 1 : vector<43x8xf32>, vector<43x8xf32>, vector<43x8xf32>, vector<43x8xf32> -> vector<43x32xf32>
    %c0_25 = arith.constant 0 : index
    %c0_26 = arith.constant 0 : index
    %19 = vector.load %arg2[%c0_25, %c0_26] : memref<32x16xf32, #tpu.memory_space<vmem>>, vector<32x16xf32>
    %cst_27 = arith.constant dense<0.000000e+00> : vector<43x16xf32>
    %20 = tpu.matmul %18, %19, %cst_27 {dimension_numbers = #tpu.dot_dimension_numbers<[1], [0], [0], [1], [0, 0, 1, 1], [], []>} : vector<43x32xf32>, vector<32x16xf32>, vector<43x16xf32> -> vector<43x16xf32>
    %c0_28 = arith.constant 0 : index
    %c0_29 = arith.constant 0 : index
    %21 = vector.load %arg3[%c0_28, %c0_29] : memref<1x16xf32, #tpu.memory_space<vmem>>, vector<1x16xf32>
    %22 = vector.broadcast %21 : vector<1x16xf32> to vector<43x16xf32>
    %23 = arith.addf %20, %22 : vector<43x16xf32>
    %cst_30 = arith.constant 0.000000e+00 : f32
    %24 = vector.broadcast %cst_30 : f32 to vector<43x16xf32>
    %25 = arith.maximumf %23, %24 : vector<43x16xf32>
    %c0_31 = arith.constant 0 : index
    %c0_32 = arith.constant 0 : index
    %26 = vector.load %arg10[%c0_31, %c0_32] : memref<43x16xf32, #tpu.memory_space<vmem>>, vector<43x16xf32>
    tpu.vector_store %arg10[%c0_31, %c0_32], %25 {strides = array<i32>} : memref<43x16xf32, #tpu.memory_space<vmem>>, vector<43x16xf32>,
    %c0_33 = arith.constant 0 : index
    %c0_34 = arith.constant 0 : index
    %27 = vector.load %arg10[%c0_33, %c0_34] : memref<43x16xf32, #tpu.memory_space<vmem>>, vector<36x16xf32>
    %c1_35 = arith.constant 1 : index
    %c0_36 = arith.constant 0 : index
    %28 = vector.load %arg10[%c1_35, %c0_36] : memref<43x16xf32, #tpu.memory_space<vmem>>, vector<36x16xf32>
    %c6_37 = arith.constant 6 : index
    %c0_38 = arith.constant 0 : index
    %29 = vector.load %arg10[%c6_37, %c0_38] : memref<43x16xf32, #tpu.memory_space<vmem>>, vector<36x16xf32>
    %c7_39 = arith.constant 7 : index
    %c0_40 = arith.constant 0 : index
    %30 = vector.load %arg10[%c7_39, %c0_40] : memref<43x16xf32, #tpu.memory_space<vmem>>, vector<36x16xf32>
    %31 = tpu.concatenate %27, %28, %29, %30 in 1 : vector<36x16xf32>, vector<36x16xf32>, vector<36x16xf32>, vector<36x16xf32> -> vector<36x64xf32>
    %c0_41 = arith.constant 0 : index
    %c0_42 = arith.constant 0 : index
    %32 = vector.load %arg4[%c0_41, %c0_42] : memref<64x16xf32, #tpu.memory_space<vmem>>, vector<64x16xf32>
    %cst_43 = arith.constant dense<0.000000e+00> : vector<36x16xf32>
    %33 = tpu.matmul %31, %32, %cst_43 {dimension_numbers = #tpu.dot_dimension_numbers<[1], [0], [0], [1], [0, 0, 1, 1], [], []>} : vector<36x64xf32>, vector<64x16xf32>, vector<36x16xf32> -> vector<36x16xf32>
    %c0_44 = arith.constant 0 : index
    %c0_45 = arith.constant 0 : index
    %34 = vector.load %arg5[%c0_44, %c0_45] : memref<1x16xf32, #tpu.memory_space<vmem>>, vector<1x16xf32>
    %35 = vector.broadcast %34 : vector<1x16xf32> to vector<36x16xf32>
    %36 = arith.addf %33, %35 : vector<36x16xf32>
    %cst_46 = arith.constant 0.000000e+00 : f32
    %37 = vector.broadcast %cst_46 : f32 to vector<36x16xf32>
    %38 = arith.maximumf %36, %37 : vector<36x16xf32>
    %c0_47 = arith.constant 0 : index
    %c0_48 = arith.constant 0 : index
    %39 = vector.load %arg6[%c0_47, %c0_48] : memref<36x16xf32, #tpu.memory_space<vmem>>, vector<36x16xf32>
    %40 = arith.mulf %38, %39 : vector<36x16xf32>
    %41 = tpu.iota {dimensions = array<i32: 1>} : vector<1x36xi32>
    %42 = tpu.iota {dimensions = array<i32: 0>} : vector<1x36xi32>
    %c36_i32 = arith.constant 36 : i32
    %43 = vector.broadcast %c36_i32 : i32 to vector<1x36xi32>
    %44 = arith.muli %42, %43 : vector<1x36xi32>
    %45 = arith.cmpi sge, %41, %44 : vector<1x36xi32>
    %c36_i32_49 = arith.constant 36 : i32
    %46 = vector.broadcast %c36_i32_49 : i32 to vector<1x36xi32>
    %47 = arith.addi %44, %46 : vector<1x36xi32>
    %48 = arith.cmpi slt, %41, %47 : vector<1x36xi32>
    %49 = arith.andi %45, %48 : vector<1x36xi1>
    %50 = arith.extui %49 : vector<1x36xi1> to vector<1x36xi32>
    %51 = arith.sitofp %50 : vector<1x36xi32> to vector<1x36xf32>
    %cst_50 = arith.constant dense<0.000000e+00> : vector<1x16xf32>
    %52 = tpu.matmul %51, %40, %cst_50 {dimension_numbers = #tpu.dot_dimension_numbers<[1], [0], [0], [1], [0, 0, 1, 1], [], []>} : vector<1x36xf32>, vector<36x16xf32>, vector<1x16xf32> -> vector<1x16xf32>
    %cst_51 = arith.constant dense<0.000000e+00> : vector<1xf32>
    %53 = vector.multi_reduction <add>, %52, %cst_51 [1] : vector<1x16xf32> to vector<1xf32>
    %54 = vector.shape_cast %53 : vector<1xf32> to vector<1x1xf32>
    %c0_52 = arith.constant 0 : index
    %c0_53 = arith.constant 0 : index
    %55 = memref.load %arg7[%c0_52, %c0_53] : memref<1x1xf32, #tpu.memory_space<smem>>
    %56 = vector.broadcast %55 : f32 to vector<1x1xf32>
    %57 = arith.addf %54, %56 : vector<1x1xf32>
    %c0_54 = arith.constant 0 : index
    %c0_55 = arith.constant 0 : index
    %c0_56 = arith.constant 0 : index
    %58 = vector.load %arg8[%c0_54, %c0_55, %c0_56] : memref<1x1x1xf32, #tpu.memory_space<vmem>>, vector<1x1x1xf32>
    %59 = vector.shape_cast %58 : vector<1x1x1xf32> to vector<1x1xf32>
    %60 = vector.shape_cast %57 : vector<1x1xf32> to vector<1x1x1xf32>
    tpu.vector_store %arg8[%c0_54, %c0_55, %c0_56], %60 {strides = array<i32>} : memref<1x1x1xf32, #tpu.memory_space<vmem>>, vector<1x1x1xf32>,
    return
  }
  func.func @transform_0(%arg0: i32) -> (i32, i32, i32, i32) {
    %c0_i32 = arith.constant 0 : i32
    %c0_i32_0 = arith.constant 0 : i32
    %c0_i32_1 = arith.constant 0 : i32
    %c0_i32_2 = arith.constant 0 : i32
    return %arg0, %c0_i32, %c0_i32_0, %c0_i32_1 : i32, i32, i32, i32
  }
  func.func @transform_1(%arg0: i32) -> (i32, i32) {
    %c0_i32 = arith.constant 0 : i32
    %c0_i32_0 = arith.constant 0 : i32
    %c0_i32_1 = arith.constant 0 : i32
    return %c0_i32, %c0_i32_0 : i32, i32
  }
  func.func @transform_2(%arg0: i32) -> (i32, i32) {
    %c0_i32 = arith.constant 0 : i32
    %c0_i32_0 = arith.constant 0 : i32
    %c0_i32_1 = arith.constant 0 : i32
    return %c0_i32, %c0_i32_0 : i32, i32
  }
  func.func @transform_3(%arg0: i32) -> (i32, i32) {
    %c0_i32 = arith.constant 0 : i32
    %c0_i32_0 = arith.constant 0 : i32
    %c0_i32_1 = arith.constant 0 : i32
    return %c0_i32, %c0_i32_0 : i32, i32
  }
  func.func @transform_4(%arg0: i32) -> (i32, i32) {
    %c0_i32 = arith.constant 0 : i32
    %c0_i32_0 = arith.constant 0 : i32
    %c0_i32_1 = arith.constant 0 : i32
    return %c0_i32, %c0_i32_0 : i32, i32
  }
  func.func @transform_5(%arg0: i32) -> (i32, i32) {
    %c0_i32 = arith.constant 0 : i32
    %c0_i32_0 = arith.constant 0 : i32
    %c0_i32_1 = arith.constant 0 : i32
    return %c0_i32, %c0_i32_0 : i32, i32
  }
  func.func @transform_6(%arg0: i32) -> (i32, i32) {
    %c0_i32 = arith.constant 0 : i32
    %c0_i32_0 = arith.constant 0 : i32
    %c0_i32_1 = arith.constant 0 : i32
    return %c0_i32, %c0_i32_0 : i32, i32
  }
  func.func @transform_7(%arg0: i32) -> (i32, i32, i32) {
    %c0_i32 = arith.constant 0 : i32
    %c0_i32_0 = arith.constant 0 : i32
    %c0_i32_1 = arith.constant 0 : i32
    return %arg0, %c0_i32, %c0_i32_0 : i32, i32, i32
  }
}

</mosaic_0001>

<llo_original>
// kernel: bloc_out_no_bn_forward.1
$region0: #{bloc_out_no_bn_forward.1}
  #allocation0 [shape = 'u32[]', space=smem, size = 0x4, offset = 0x4, fixed_abs, tag = 'smem constant byte address 0x4 - core index']
  #allocation1 [shape = 'u32[144,128]{1,0:T(1,128)}', space=vmem, size = 0x12000, scoped, tag = 'internal scratch']
  #allocation2 [shape = 'f32[50,8]{1,0:T(8,128)}', space=vmem, size = 0x7000, scoped, tag = 'scratch operand']
  #allocation3 [shape = 'f32[43,16]{1,0:T(8,128)}', space=vmem, size = 0x6000, scoped, tag = 'scratch operand']
  #allocation4 [shape = 'f32[1,1]{1,0:T(1,128)S(6)}', space=smem, size = 0x200, scoped, tag = 'scoped memory for bloc_out_no_bn_forward.1']
  %s0 = inlined_call_operand.vmem [shape: f32[2,4,4,8], index: 0, kind: input, shape index: {}]
  %s1 = inlined_call_operand.vmem [shape: f32[32,16], index: 1, kind: input, shape index: {}]
  %s2 = inlined_call_operand.vmem [shape: f32[1,16], index: 2, kind: input, shape index: {}]
  %s3 = inlined_call_operand.vmem [shape: f32[64,16], index: 3, kind: input, shape index: {}]
  %s4 = inlined_call_operand.vmem [shape: f32[1,16], index: 4, kind: input, shape index: {}]
  %s5 = inlined_call_operand.vmem [shape: f32[36,16], index: 5, kind: input, shape index: {}]
  %s6 = inlined_call_operand.<no memory space> [shape: f32[1,1], index: 6, kind: input, shape index: {}]
  %s7 = inlined_call_operand.vmem [shape: f32[2,1,1], index: 7, kind: output, shape index: {}]
  %s8 = sld [smem:[#allocation0]]
  $region61: #{bloc_out_no_bn_forward.1} parent=0
    _
  %s10 = ssub.s32 1, %s8
  %s11 = scalar_select 0, %s10, %s8
  %12 = sst [smem:[#allocation4]] %s6
  loop: start=0, step=1, limit=4
  $region2: #{bloc_out_no_bn_forward.1} parent=0 // loop_pre_header
    _
  $region3: #{bloc_out_no_bn_forward.1} parent=0 // loop_header
    %s14 = sphi 0, %s18
    %p15 = scmp.ge.s32.totalorder %s14, 4
    %s24 = sphi 0, %s26
    %s27 = sphi 0, %s24
    %s28 = sphi 0, %s27
    %s44 = sphi 0, %s28
    %s48 = sphi 0, %s48
    %s50 = sphi 0, %s48
    %s51 = sphi 0, %s50
    %s65 = sphi 0, %s51
    %s69 = sphi 0, %s69
    %s71 = sphi 0, %s69
    %s72 = sphi 0, %s71
    %s86 = sphi 0, %s72
    %s90 = sphi 0, %s90
    %s92 = sphi 0, %s90
    %s93 = sphi 0, %s92
    %s107 = sphi 0, %s93
    %s111 = sphi 0, %s111
    %s113 = sphi 0, %s111
    %s114 = sphi 0, %s113
    %s128 = sphi 0, %s114
    %s132 = sphi 0, %s132
    %s134 = sphi 0, %s132
    %s135 = sphi 0, %s134
    %s149 = sphi 0, %s135
    %s153 = sphi 0, %s153
    %s155 = sphi 0, %s153
    %s156 = sphi 0, %s155
    %s170 = sphi 0, %s156
    %s176 = sphi 0, %s178
    %s179 = sphi 0, %s176
    %s180 = sphi 0, %s179
    %s196 = sphi 0, %s180
  $region4: #{bloc_out_no_bn_forward.1} parent=0 // loop_header_branch
    %17 = sbr.rel (%p15) target = $region8
  $region5: #{bloc_out_no_bn_forward.1} parent=0 // loop_body
    %s19 = ssub.s32 %s14, 1
    %s20 = ssub.s32 %s14, 2
    %s21 = sadd.s32 %s14, 1
    %s22 = ssub.s32 %s14, %s21
    %p23 = scmp.eq.s32.totalorder %s22, 0
    %s25 = sadd.s32 %s24, 1
    %s26 = scalar_select %p23, %s24, %s25
    %p29 = pneg %p23
    %p30 = scmp.eq.s32.totalorder %s14, 1
    %p31 = por %p29, %p30
    %p32 = scmp.ne.s32.totalorder %s24, %s27
    %p33 = scmp.eq.s32.totalorder %s14, 0
    %p34 = por %p32, %p33
    %p35 = scmp.ne.s32.totalorder %s24, %s27
    %p36 = scmp.eq.s32.totalorder %s19, 1
    %p37 = por %p35, %p36
    %p38 = scmp.ne.s32.totalorder %s27, %s28
    %p39 = scmp.eq.s32.totalorder %s19, 0
    %p40 = por %p38, %p39
    %p41 = scmp.ne.s32.totalorder %s27, %s28
    %p42 = scmp.eq.s32.totalorder %s20, 1
    %p43 = por %p41, %p42
    %p45 = scmp.ne.s32.totalorder %s28, %s44
    %p46 = scmp.eq.s32.totalorder %s20, 0
    %p47 = por %p45, %p46
    %s49 = sadd.s32 %s48, 1
    %p52 = scmp.eq.s32.totalorder %s14, 1
    %p53 = scmp.ne.s32.totalorder %s48, %s50
    %p54 = scmp.eq.s32.totalorder %s14, 0
    %p55 = por %p53, %p54
    %p56 = scmp.ne.s32.totalorder %s48, %s50
    %p57 = scmp.eq.s32.totalorder %s19, 1
    %p58 = por %p56, %p57
    %p59 = scmp.ne.s32.totalorder %s50, %s51
    %p60 = scmp.eq.s32.totalorder %s19, 0
    %p61 = por %p59, %p60
    %p62 = scmp.ne.s32.totalorder %s50, %s51
    %p63 = scmp.eq.s32.totalorder %s20, 1
    %p64 = por %p62, %p63
    %p66 = scmp.ne.s32.totalorder %s51, %s65
    %p67 = scmp.eq.s32.totalorder %s20, 0
    %p68 = por %p66, %p67
    %s70 = sadd.s32 %s69, 1
    %p73 = scmp.eq.s32.totalorder %s14, 1
    %p74 = scmp.ne.s32.totalorder %s69, %s71
    %p75 = scmp.eq.s32.totalorder %s14, 0
    %p76 = por %p74, %p75
    %p77 = scmp.ne.s32.totalorder %s69, %s71
    %p78 = scmp.eq.s32.totalorder %s19, 1
    %p79 = por %p77, %p78
    %p80 = scmp.ne.s32.totalorder %s71, %s72
    %p81 = scmp.eq.s32.totalorder %s19, 0
    %p82 = por %p80, %p81
    %p83 = scmp.ne.s32.totalorder %s71, %s72
    %p84 = scmp.eq.s32.totalorder %s20, 1
    %p85 = por %p83, %p84
    %p87 = scmp.ne.s32.totalorder %s72, %s86
    %p88 = scmp.eq.s32.totalorder %s20, 0
    %p89 = por %p87, %p88
    %s91 = sadd.s32 %s90, 1
    %p94 = scmp.eq.s32.totalorder %s14, 1
    %p95 = scmp.ne.s32.totalorder %s90, %s92
    %p96 = scmp.eq.s32.totalorder %s14, 0
    %p97 = por %p95, %p96
    %p98 = scmp.ne.s32.totalorder %s90, %s92
    %p99 = scmp.eq.s32.totalorder %s19, 1
    %p100 = por %p98, %p99
    %p101 = scmp.ne.s32.totalorder %s92, %s93
    %p102 = scmp.eq.s32.totalorder %s19, 0
    %p103 = por %p101, %p102
    %p104 = scmp.ne.s32.totalorder %s92, %s93
    %p105 = scmp.eq.s32.totalorder %s20, 1
    %p106 = por %p104, %p105
    %p108 = scmp.ne.s32.totalorder %s93, %s107
    %p109 = scmp.eq.s32.totalorder %s20, 0
    %p110 = por %p108, %p109
    %s112 = sadd.s32 %s111, 1
    %p115 = scmp.eq.s32.totalorder %s14, 1
    %p116 = scmp.ne.s32.totalorder %s111, %s113
    %p117 = scmp.eq.s32.totalorder %s14, 0
    %p118 = por %p116, %p117
    %p119 = scmp.ne.s32.totalorder %s111, %s113
    %p120 = scmp.eq.s32.totalorder %s19, 1
    %p121 = por %p119, %p120
    %p122 = scmp.ne.s32.totalorder %s113, %s114
    %p123 = scmp.eq.s32.totalorder %s19, 0
    %p124 = por %p122, %p123
    %p125 = scmp.ne.s32.totalorder %s113, %s114
    %p126 = scmp.eq.s32.totalorder %s20, 1
    %p127 = por %p125, %p126
    %p129 = scmp.ne.s32.totalorder %s114, %s128
    %p130 = scmp.eq.s32.totalorder %s20, 0
    %p131 = por %p129, %p130
    %s133 = sadd.s32 %s132, 1
    %p136 = scmp.eq.s32.totalorder %s14, 1
    %p137 = scmp.ne.s32.totalorder %s132, %s134
    %p138 = scmp.eq.s32.totalorder %s14, 0
    %p139 = por %p137, %p138
    %p140 = scmp.ne.s32.totalorder %s132, %s134
    %p141 = scmp.eq.s32.totalorder %s19, 1
    %p142 = por %p140, %p141
    %p143 = scmp.ne.s32.totalorder %s134, %s135
    %p144 = scmp.eq.s32.totalorder %s19, 0
    %p145 = por %p143, %p144
    %p146 = scmp.ne.s32.totalorder %s134, %s135
    %p147 = scmp.eq.s32.totalorder %s20, 1
    %p148 = por %p146, %p147
    %p150 = scmp.ne.s32.totalorder %s135, %s149
    %p151 = scmp.eq.s32.totalorder %s20, 0
    %p152 = por %p150, %p151
    %s154 = sadd.s32 %s153, 1
    %p157 = scmp.eq.s32.totalorder %s14, 1
    %p158 = scmp.ne.s32.totalorder %s153, %s155
    %p159 = scmp.eq.s32.totalorder %s14, 0
    %p160 = por %p158, %p159
    %p161 = scmp.ne.s32.totalorder %s153, %s155
    %p162 = scmp.eq.s32.totalorder %s19, 1
    %p163 = por %p161, %p162
    %p164 = scmp.ne.s32.totalorder %s155, %s156
    %p165 = scmp.eq.s32.totalorder %s19, 0
    %p166 = por %p164, %p165
    %p167 = scmp.ne.s32.totalorder %s155, %s156
    %p168 = scmp.eq.s32.totalorder %s20, 1
    %p169 = por %p167, %p168
    %p171 = scmp.ne.s32.totalorder %s156, %s170
    %p172 = scmp.eq.s32.totalorder %s20, 0
    %p173 = por %p171, %p172
    %s174 = ssub.s32 %s14, %s21
    %p175 = scmp.eq.s32.totalorder %s174, 0
    %s177 = sadd.s32 %s176, 1
    %s178 = scalar_select %p175, %s176, %s177
    %p181 = pneg %p175
    %p182 = scmp.eq.s32.totalorder %s14, 1
    %p183 = por %p181, %p182
    %p184 = scmp.ne.s32.totalorder %s176, %s179
    %p185 = scmp.eq.s32.totalorder %s14, 0
    %p186 = por %p184, %p185
    %p187 = scmp.ne.s32.totalorder %s176, %s179
    %p188 = scmp.eq.s32.totalorder %s19, 1
    %p189 = por %p187, %p188
    %p190 = scmp.ne.s32.totalorder %s179, %s180
    %p191 = scmp.eq.s32.totalorder %s19, 0
    %p192 = por %p190, %p191
    %p193 = scmp.ne.s32.totalorder %s179, %s180
    %p194 = scmp.eq.s32.totalorder %s20, 1
    %p195 = por %p193, %p194
    %p197 = scmp.ne.s32.totalorder %s180, %s196
    %p198 = scmp.eq.s32.totalorder %s20, 0
    %p199 = por %p197, %p198
    %p200 = scmp.le.s32.totalorder 1, %s14
    %p201 = scmp.lt.s32.totalorder %s14, 3
    %p202 = pnand %p200, %p201
    %p203 = pneg %p202
    // Predicated region
    $region9: #{bloc_out_no_bn_forward.1} parent=5 // pred_check
      _
    $region10: #{bloc_out_no_bn_forward.1} parent=5 // pred_check_branch
      %205 = sbr.rel (%p202) target = $region12
    $region11: #{bloc_out_no_bn_forward.1} parent=5 // pred_region
      %s206 = ssub.s32 %s14, 1
      // Predicated region
      $region13: #{bloc_out_no_bn_forward.1} parent=11 // pred_check
        %p207 = pneg %p61
      $region14: #{bloc_out_no_bn_forward.1} parent=11 // pred_check_branch
        %209 = sbr.rel (%p207) target = $region16
      $region15: #{bloc_out_no_bn_forward.1} parent=11 // pred_region
        _
      $region16: #{bloc_out_no_bn_forward.1} parent=11 // pred_fallthru
        _
      // Predicated region
      $region17: #{bloc_out_no_bn_forward.1} parent=11 // pred_check
        %p210 = pneg %p82
      $region18: #{bloc_out_no_bn_forward.1} parent=11 // pred_check_branch
        %212 = sbr.rel (%p210) target = $region20
      $region19: #{bloc_out_no_bn_forward.1} parent=11 // pred_region
        _
      $region20: #{bloc_out_no_bn_forward.1} parent=11 // pred_fallthru
        _
      // Predicated region
      $region21: #{bloc_out_no_bn_forward.1} parent=11 // pred_check
        %p213 = pneg %p103
      $region22: #{bloc_out_no_bn_forward.1} parent=11 // pred_check_branch
        %215 = sbr.rel (%p213) target = $region24
      $region23: #{bloc_out_no_bn_forward.1} parent=11 // pred_region
        _
      $region24: #{bloc_out_no_bn_forward.1} parent=11 // pred_fallthru
        _
      // Predicated region
      $region25: #{bloc_out_no_bn_forward.1} parent=11 // pred_check
        %p216 = pneg %p124
      $region26: #{bloc_out_no_bn_forward.1} parent=11 // pred_check_branch
        %218 = sbr.rel (%p216) target = $region28
      $region27: #{bloc_out_no_bn_forward.1} parent=11 // pred_region
        _
      $region28: #{bloc_out_no_bn_forward.1} parent=11 // pred_fallthru
        _
      // Predicated region
      $region29: #{bloc_out_no_bn_forward.1} parent=11 // pred_check
        %p219 = pneg %p145
      $region30: #{bloc_out_no_bn_forward.1} parent=11 // pred_check_branch
        %221 = sbr.rel (%p219) target = $region32
      $region31: #{bloc_out_no_bn_forward.1} parent=11 // pred_region
        _
      $region32: #{bloc_out_no_bn_forward.1} parent=11 // pred_fallthru
        _
      // Predicated region
      $region33: #{bloc_out_no_bn_forward.1} parent=11 // pred_check
        %p222 = pneg %p166
      $region34: #{bloc_out_no_bn_forward.1} parent=11 // pred_check_branch
        %224 = sbr.rel (%p222) target = $region36
      $region35: #{bloc_out_no_bn_forward.1} parent=11 // pred_region
        _
      $region36: #{bloc_out_no_bn_forward.1} parent=11 // pred_fallthru
        _
    $region12: #{bloc_out_no_bn_forward.1} parent=5 // pred_fallthru
      _
    %p225 = scmp.lt.s32.totalorder %s14, 2
    // Predicated region
    $region37: #{bloc_out_no_bn_forward.1} parent=5 // pred_check
      %p226 = pneg %p225
    $region38: #{bloc_out_no_bn_forward.1} parent=5 // pred_check_branch
      %228 = sbr.rel (%p226) target = $region40
    $region39: #{bloc_out_no_bn_forward.1} parent=5 // pred_region
      // Predicated region
      $region41: #{bloc_out_no_bn_forward.1} parent=39 // pred_check
        %p229 = pneg %p34
      $region42: #{bloc_out_no_bn_forward.1} parent=39 // pred_check_branch
        %231 = sbr.rel (%p229) target = $region44
      $region43: #{bloc_out_no_bn_forward.1} parent=39 // pred_region
        %p232 = scmp.lt.s32.totalorder %s14, 1
        %s233 = scalar_select %p232, %s14, 1
        %s234 = smul.addr %s233, 4
        %s235 = smul.addr %s234, 4
        %s236 = scalar_lea.vmem %s0, %s235
      $region44: #{bloc_out_no_bn_forward.1} parent=39 // pred_fallthru
        _
    $region40: #{bloc_out_no_bn_forward.1} parent=5 // pred_fallthru
      _
    %p237 = scmp.le.s32.totalorder 1, %s14
    %p238 = scmp.lt.s32.totalorder %s14, 3
    %p239 = pnand %p237, %p238
    %p240 = pneg %p239
    // Predicated region
    $region45: #{bloc_out_no_bn_forward.1} parent=5 // pred_check
      _
    $region46: #{bloc_out_no_bn_forward.1} parent=5 // pred_check_branch
      %242 = sbr.rel (%p239) target = $region48
    $region47: #{bloc_out_no_bn_forward.1} parent=5 // pred_region
      %s243 = ssub.s32 %s14, 1
      %p244 = scmp.lt.s32.totalorder %s19, 1
      %s245 = scalar_select %p244, %s19, 1
      %s246 = smul.addr %s245, 4
      %s247 = smul.addr %s246, 4
      %s248 = scalar_lea.vmem %s0, %s247
      %p249 = pneg %p40
      %p250 = pneg %p37
      %p251 = pneg %p61
      %p252 = pneg %p58
      %p253 = pneg %p82
      %p254 = pneg %p79
      %p255 = pneg %p103
      %p256 = pneg %p100
      %p257 = pneg %p124
      %p258 = pneg %p121
      %p259 = pneg %p145
      %p260 = pneg %p142
      %p261 = pneg %p166
      %p262 = pneg %p163
      %p263 = pneg %p192
      %p264 = pneg %p189
      %p265 = scmp.lt.s32.totalorder %s19, 1
      %s266 = scalar_select %p265, %s19, 1
      %s267 = scalar_lea.vmem %s7, %s266
      %p268 = scmp.lt.s32.totalorder %s19, 1
      %s269 = scalar_select %p268, %s19, 1
      %s270 = smul.addr %s269, 4
      %s271 = smul.addr %s270, 4
      %s272 = scalar_lea.vmem %s0, %s271
      %p273 = scmp.lt.s32.totalorder %s19, 1
      %s274 = scalar_select %p273, %s19, 1
      %s275 = scalar_lea.vmem %s7, %s274
      %vm276 = vcmask 64512
      %277 = vst.msk [vmem:[#allocation2] sm:$0xff] %vm276, 0.0
      %278 = vst.msk [vmem:[#allocation2 + $0x8] sm:$0xff] %vm276, 0.0
      %279 = vst.msk [vmem:[#allocation2 + $0x10] sm:$0xff] %vm276, 0.0
      %280 = vst.msk [vmem:[#allocation2 + $0x18] sm:$0xff] %vm276, 0.0
      %281 = vst.msk [vmem:[#allocation2 + $0x20] sm:$0xff] %vm276, 0.0
      %282 = vst.msk [vmem:[#allocation2 + $0x28] sm:$0xff] %vm276, 0.0
      %vm283 = vcmask 58368
      %284 = vst.msk [vmem:[#allocation2 + $0x30] sm:$0x3] %vm283, 0.0
      %v285 = vld [vmem:[%s272] sm:$0xf]
      %vm286 = vcmask 60416
      %287 = vst.msk [vmem:[#allocation2 + $0x7] sm:$0xf] %vm286, %v285
      %s288 = scalar_lea.vmem %s272, 4
      %v289 = vld [vmem:[%s288] sm:$0xf]
      %290 = vst.msk [vmem:[#allocation2 + $0xd] sm:$0xf] %vm286, %v289
      %s291 = scalar_lea.vmem %s272, 8
      %v292 = vld [vmem:[%s291] sm:$0xf]
      %293 = vst.msk [vmem:[#allocation2 + $0x13] sm:$0xf] %vm286, %v292
      %s294 = scalar_lea.vmem %s272, 12
      %v295 = vld [vmem:[%s294] sm:$0xf]
      %296 = vst.msk [vmem:[#allocation2 + $0x19] sm:$0xf] %vm286, %v295
      %v297 = vld [vmem:[#allocation2] sm:$0xff]
      %v298 = vld [vmem:[#allocation2 + $0x8] sm:$0xff]
      %v299 = vld [vmem:[#allocation2 + $0x10] sm:$0xff]
      %v300 = vld [vmem:[#allocation2 + $0x18] sm:$0xff]
      %v301 = vld [vmem:[#allocation2 + $0x20] sm:$0xff]
      %v302 = vld [vmem:[#allocation2 + $0x28] sm:$0x7]
      %v303 = vld [vmem:[#allocation2 + $0x1] sm:$0xff]
      %v304 = vld [vmem:[#allocation2 + $0x9] sm:$0xff]
      %v305 = vld [vmem:[#allocation2 + $0x11] sm:$0xff]
      %v306 = vld [vmem:[#allocation2 + $0x19] sm:$0xff]
      %v307 = vld [vmem:[#allocation2 + $0x21] sm:$0xff]
      %v308 = vld [vmem:[#allocation2 + $0x29] sm:$0x7]
      %v309 = vld [vmem:[#allocation2 + $0x6] sm:$0xff]
      %v310 = vld [vmem:[#allocation2 + $0xe] sm:$0xff]
      %v311 = vld [vmem:[#allocation2 + $0x16] sm:$0xff]
      %v312 = vld [vmem:[#allocation2 + $0x1e] sm:$0xff]
      %v313 = vld [vmem:[#allocation2 + $0x26] sm:$0xff]
      %v314 = vld [vmem:[#allocation2 + $0x2e] sm:$0x7]
      %v315 = vld [vmem:[#allocation2 + $0x7] sm:$0xff]
      %v316 = vld [vmem:[#allocation2 + $0xf] sm:$0xff]
      %v317 = vld [vmem:[#allocation2 + $0x17] sm:$0xff]
      %v318 = vld [vmem:[#allocation2 + $0x1f] sm:$0xff]
      %v319 = vld [vmem:[#allocation2 + $0x27] sm:$0xff]
      %v320 = vld [vmem:[#allocation2 + $0x2f] sm:$0x7]
      %327 = vrot.lane.b32.xlu0 %v303, 8
      %v328 = vpop.permute.xlu0 %327
      %329 = vrot.lane.b32.xlu0 %v304, 8
      %v330 = vpop.permute.xlu0 %329
      %331 = vrot.lane.b32.xlu0 %v305, 8
      %v332 = vpop.permute.xlu0 %331
      %333 = vrot.lane.b32.xlu0 %v306, 8
      %v334 = vpop.permute.xlu0 %333
      %335 = vrot.lane.b32.xlu0 %v307, 8
      %v336 = vpop.permute.xlu0 %335
      %337 = vrot.lane.b32.xlu0 %v308, 8
      %v338 = vpop.permute.xlu0 %337
      %351 = vrot.lane.b32.xlu0 %v309, 16
      %v352 = vpop.permute.xlu0 %351
      %353 = vrot.lane.b32.xlu0 %v310, 16
      %v354 = vpop.permute.xlu0 %353
      %355 = vrot.lane.b32.xlu0 %v311, 16
      %v356 = vpop.permute.xlu0 %355
      %357 = vrot.lane.b32.xlu0 %v312, 16
      %v358 = vpop.permute.xlu0 %357
      %359 = vrot.lane.b32.xlu0 %v313, 16
      %v360 = vpop.permute.xlu0 %359
      %361 = vrot.lane.b32.xlu0 %v314, 16
      %v362 = vpop.permute.xlu0 %361
      %375 = vrot.lane.b32.xlu0 %v315, 24
      %v376 = vpop.permute.xlu0 %375
      %377 = vrot.lane.b32.xlu0 %v316, 24
      %v378 = vpop.permute.xlu0 %377
      %379 = vrot.lane.b32.xlu0 %v317, 24
      %v380 = vpop.permute.xlu0 %379
      %381 = vrot.lane.b32.xlu0 %v318, 24
      %v382 = vpop.permute.xlu0 %381
      %383 = vrot.lane.b32.xlu0 %v319, 24
      %v384 = vpop.permute.xlu0 %383
      %385 = vrot.lane.b32.xlu0 %v320, 24
      %v386 = vpop.permute.xlu0 %385
      %v393 = vsel %vm276, %v297, %v328
      %v394 = vsel %vm276, %v298, %v330
      %v395 = vsel %vm276, %v299, %v332
      %v396 = vsel %vm276, %v300, %v334
      %v397 = vsel %vm276, %v301, %v336
      %v398 = vsel %vm276, %v302, %v338
      %vm399 = vcmask 130048
      %v400 = vsel %vm399, %v393, %v352
      %v401 = vsel %vm399, %v394, %v354
      %v402 = vsel %vm399, %v395, %v356
      %v403 = vsel %vm399, %v396, %v358
      %v404 = vsel %vm399, %v397, %v360
      %v405 = vsel %vm399, %v398, %v362
      %vm406 = vcmask 195584
      %v407 = vsel %vm406, %v400, %v376
      %v408 = vsel %vm406, %v401, %v378
      %v409 = vsel %vm406, %v402, %v380
      %v410 = vsel %vm406, %v403, %v382
      %v411 = vsel %vm406, %v404, %v384
      %v412 = vsel %vm406, %v405, %v386
      %v413 = vld [vmem:[%s1] sm:$0xff]
      %v414 = vld [vmem:[%s1 + $0x8] sm:$0xff]
      %v415 = vld [vmem:[%s1 + $0x10] sm:$0xff]
      %v416 = vld [vmem:[%s1 + $0x18] sm:$0xff]
      %v417 = vld [vmem:[%s2] sm:$0x1]
      %v419 = vlaneseq
      %v420 = vshrl.u32 %v419, 7
      %v421 = vsub.s32 0, %v420
      %v422 = vrot.slane %v417, %v421
      %vm424 = vcmask 261120
      %v426 = vsel %vm424, %v407, 0
      %v429 = vsel %vm424, %v408, 0
      %v432 = vsel %vm424, %v409, 0
      %v435 = vsel %vm424, %v410, 0
      %v438 = vsel %vm424, %v411, 0
      %v441 = vsel %vm424, %v412, 0
      %443 = vmatprep.subr.mxu0 0.0
      %444 = vmatpush1.msra.mxu0 %v413
      %445 = vmatprep.subr.mxu0 0.0
      %446 = vmatpush1.msra.mxu0 %v414
      %447 = vmatprep.subr.mxu0 0.0
      %448 = vmatpush1.msra.mxu0 %v415
      %449 = vmatprep.subr.mxu0 0.0
      %450 = vmatpush1.msra.mxu0 %v416
      %451 = vmatprep.subr.mxu0 0.0
      %452 = vmatpush1.msra.mxu0 0.0
      %453 = vmatprep.subr.mxu0 0.0
      %454 = vmatpush1.msra.mxu0 0.0
      %455 = vmatprep.subr.mxu0 0.0
      %456 = vmatpush1.msra.mxu0 0.0
      %457 = vmatprep.subr.mxu0 0.0
      %458 = vmatpush1.msra.mxu0 0.0
      %459 = vmatprep.subr.mxu0 0.0
      %460 = vmatpush1.msra.mxu0 0.0
      %461 = vmatprep.subr.mxu0 0.0
      %462 = vmatpush1.msra.mxu0 0.0
      %463 = vmatprep.subr.mxu0 0.0
      %464 = vmatpush1.msra.mxu0 0.0
      %465 = vmatprep.subr.mxu0 0.0
      %466 = vmatpush1.msra.mxu0 0.0
      %467 = vmatprep.subr.mxu0 0.0
      %468 = vmatpush1.msra.mxu0 0.0
      %469 = vmatprep.subr.mxu0 0.0
      %470 = vmatpush1.msra.mxu0 0.0
      %471 = vmatprep.subr.mxu0 0.0
      %472 = vmatpush1.msra.mxu0 0.0
      %473 = vmatprep.subr.mxu0 0.0
      %474 = vmatpush1.msra.mxu0 0.0
      %475 = vmatprep.subr.mxu0 0.0
      %476 = vmatpush1.msra.mxu0 0.0
      %477 = vmatprep.subr.mxu0 0.0
      %478 = vmatpush1.msra.mxu0 0.0
      %479 = vmatprep.subr.mxu0 0.0
      %480 = vmatpush1.msra.mxu0 0.0
      %481 = vmatprep.subr.mxu0 0.0
      %482 = vmatpush1.msra.mxu0 0.0
      %483 = vmatprep.subr.mxu0 0.0
      %484 = vmatpush1.msra.mxu0 0.0
      %485 = vmatprep.subr.mxu0 0.0
      %486 = vmatpush1.msra.mxu0 0.0
      %487 = vmatprep.subr.mxu0 0.0
      %488 = vmatpush1.msra.mxu0 0.0
      %489 = vmatprep.subr.mxu0 0.0
      %490 = vmatpush1.msra.mxu0 0.0
      %491 = vmatprep.subr.mxu0 0.0
      %492 = vmatpush1.msra.mxu0 0.0
      %493 = vmatprep.subr.mxu0 0.0
      %494 = vmatpush1.msra.mxu0 0.0
      %495 = vmatprep.subr.mxu0 0.0
      %496 = vmatpush1.msra.mxu0 0.0
      %497 = vmatprep.subr.mxu0 0.0
      %498 = vmatpush1.msra.mxu0 0.0
      %499 = vmatprep.subr.mxu0 0.0
      %500 = vmatpush1.msra.mxu0 0.0
      %501 = vmatprep.subr.mxu0 0.0
      %502 = vmatpush1.msra.mxu0 0.0
      %503 = vmatprep.subr.mxu0 0.0
      %504 = vmatpush1.msra.mxu0 0.0
      %505 = vmatprep.subr.mxu0 0.0
      %506 = vmatpush1.msra.mxu0 0.0
      %507 = vmatprep.mubr.f32.mxu0 0.0
      %508 = vmatmul.mubr.f32.gmra.mrb[0].mxu0 %v426
      %v509 = vpop.f32.mrb[0].mxu0
      %v510 = vadd.f32 %v422, %v509
      %v511 = vpop.f32.mrb[0].mxu0
      %512 = vmatprep.mubr.f32.mxu0 0.0
      %513 = vmatmul.mubr.f32.gmra.mrb[0].mxu0 %v429
      %v514 = vpop.f32.mrb[0].mxu0
      %v515 = vadd.f32 %v422, %v514
      %v516 = vpop.f32.mrb[0].mxu0
      %517 = vmatprep.mubr.f32.mxu0 0.0
      %518 = vmatmul.mubr.f32.gmra.mrb[0].mxu0 %v432
      %v519 = vpop.f32.mrb[0].mxu0
      %v520 = vadd.f32 %v422, %v519
      %v521 = vpop.f32.mrb[0].mxu0
      %522 = vmatprep.mubr.f32.mxu0 0.0
      %523 = vmatmul.mubr.f32.gmra.mrb[0].mxu0 %v435
      %v524 = vpop.f32.mrb[0].mxu0
      %v525 = vadd.f32 %v422, %v524
      %v526 = vpop.f32.mrb[0].mxu0
      %527 = vmatprep.mubr.f32.mxu0 0.0
      %528 = vmatmul.mubr.f32.gmra.mrb[0].mxu0 %v438
      %v529 = vpop.f32.mrb[0].mxu0
      %v530 = vadd.f32 %v422, %v529
      %v531 = vpop.f32.mrb[0].mxu0
      %532 = vmatprep.mubr.f32.mxu0 0.0
      %533 = vmatmul.mubr.f32.gmra.mrb[0].mxu0 %v441
      %v534 = vpop.f32.mrb[0].mxu0
      %v535 = vadd.f32 %v422, %v534
      %v536 = vpop.f32.mrb[0].mxu0
      %537 = vdwg.mxu0
      %v538 = vmax.f32 %v510, 0.0
      %v539 = vmax.f32 %v515, 0.0
      %v540 = vmax.f32 %v520, 0.0
      %v541 = vmax.f32 %v525, 0.0
      %v542 = vmax.f32 %v530, 0.0
      %v543 = vmax.f32 %v535, 0.0
      %544 = vst.msk [vmem:[#allocation3] sm:$0xff] %vm399, %v538
      %545 = vst.msk [vmem:[#allocation3 + $0x8] sm:$0xff] %vm399, %v539
      %546 = vst.msk [vmem:[#allocation3 + $0x10] sm:$0xff] %vm399, %v540
      %547 = vst.msk [vmem:[#allocation3 + $0x18] sm:$0xff] %vm399, %v541
      %548 = vst.msk [vmem:[#allocation3 + $0x20] sm:$0xff] %vm399, %v542
      %vm549 = vcmask 124928
      %550 = vst.msk [vmem:[#allocation3 + $0x28] sm:$0x7] %vm549, %v543
      %v551 = vld [vmem:[#allocation3] sm:$0xff]
      %v552 = vld [vmem:[#allocation3 + $0x8] sm:$0xff]
      %v553 = vld [vmem:[#allocation3 + $0x10] sm:$0xff]
      %v554 = vld [vmem:[#allocation3 + $0x18] sm:$0xff]
      %v555 = vld [vmem:[#allocation3 + $0x20] sm:$0xf]
      %v556 = vld [vmem:[#allocation3 + $0x1] sm:$0xff]
      %v557 = vld [vmem:[#allocation3 + $0x9] sm:$0xff]
      %v558 = vld [vmem:[#allocation3 + $0x11] sm:$0xff]
      %v559 = vld [vmem:[#allocation3 + $0x19] sm:$0xff]
      %v560 = vld [vmem:[#allocation3 + $0x21] sm:$0xf]
      %v561 = vld [vmem:[#allocation3 + $0x6] sm:$0xff]
      %v562 = vld [vmem:[#allocation3 + $0xe] sm:$0xff]
      %v563 = vld [vmem:[#allocation3 + $0x16] sm:$0xff]
      %v564 = vld [vmem:[#allocation3 + $0x1e] sm:$0xff]
      %v565 = vld [vmem:[#allocation3 + $0x26] sm:$0xf]
      %v566 = vld [vmem:[#allocation3 + $0x7] sm:$0xff]
      %v567 = vld [vmem:[#allocation3 + $0xf] sm:$0xff]
      %v568 = vld [vmem:[#allocation3 + $0x17] sm:$0xff]
      %v569 = vld [vmem:[#allocation3 + $0x1f] sm:$0xff]
      %v570 = vld [vmem:[#allocation3 + $0x27] sm:$0xf]
      %576 = vrot.lane.b32.xlu0 %v556, 16
      %v577 = vpop.permute.xlu0 %576
      %578 = vrot.lane.b32.xlu0 %v557, 16
      %v579 = vpop.permute.xlu0 %578
      %580 = vrot.lane.b32.xlu0 %v558, 16
      %v581 = vpop.permute.xlu0 %580
      %582 = vrot.lane.b32.xlu0 %v559, 16
      %v583 = vpop.permute.xlu0 %582
      %584 = vrot.lane.b32.xlu0 %v560, 16
      %v585 = vpop.permute.xlu0 %584
      %596 = vrot.lane.b32.xlu0 %v561, 32
      %v597 = vpop.permute.xlu0 %596
      %598 = vrot.lane.b32.xlu0 %v562, 32
      %v599 = vpop.permute.xlu0 %598
      %600 = vrot.lane.b32.xlu0 %v563, 32
      %v601 = vpop.permute.xlu0 %600
      %602 = vrot.lane.b32.xlu0 %v564, 32
      %v603 = vpop.permute.xlu0 %602
      %604 = vrot.lane.b32.xlu0 %v565, 32
      %v605 = vpop.permute.xlu0 %604
      %616 = vrot.lane.b32.xlu0 %v566, 48
      %v617 = vpop.permute.xlu0 %616
      %618 = vrot.lane.b32.xlu0 %v567, 48
      %v619 = vpop.permute.xlu0 %618
      %620 = vrot.lane.b32.xlu0 %v568, 48
      %v621 = vpop.permute.xlu0 %620
      %622 = vrot.lane.b32.xlu0 %v569, 48
      %v623 = vpop.permute.xlu0 %622
      %624 = vrot.lane.b32.xlu0 %v570, 48
      %v625 = vpop.permute.xlu0 %624
      %v631 = vsel %vm399, %v551, %v577
      %v632 = vsel %vm399, %v552, %v579
      %v633 = vsel %vm399, %v553, %v581
      %v634 = vsel %vm399, %v554, %v583
      %v635 = vsel %vm399, %v555, %v585
      %v636 = vsel %vm424, %v631, %v597
      %v637 = vsel %vm424, %v632, %v599
      %v638 = vsel %vm424, %v633, %v601
      %v639 = vsel %vm424, %v634, %v603
      %v640 = vsel %vm424, %v635, %v605
      %vm641 = vcmask 392192
      %v642 = vsel %vm641, %v636, %v617
      %v643 = vsel %vm641, %v637, %v619
      %v644 = vsel %vm641, %v638, %v621
      %v645 = vsel %vm641, %v639, %v623
      %v646 = vsel %vm641, %v640, %v625
      %v647 = vld [vmem:[%s3] sm:$0xff]
      %v648 = vld [vmem:[%s3 + $0x8] sm:$0xff]
      %v649 = vld [vmem:[%s3 + $0x10] sm:$0xff]
      %v650 = vld [vmem:[%s3 + $0x18] sm:$0xff]
      %v651 = vld [vmem:[%s3 + $0x20] sm:$0xff]
      %v652 = vld [vmem:[%s3 + $0x28] sm:$0xff]
      %v653 = vld [vmem:[%s3 + $0x30] sm:$0xff]
      %v654 = vld [vmem:[%s3 + $0x38] sm:$0xff]
      %v655 = vld [vmem:[%s4] sm:$0x1]
      %v657 = vlaneseq
      %v658 = vshrl.u32 %v657, 7
      %v659 = vsub.s32 0, %v658
      %v660 = vrot.slane %v655, %v659
      %vm662 = vcmask 523264
      %v664 = vsel %vm662, %v642, 0
      %v667 = vsel %vm662, %v643, 0
      %v670 = vsel %vm662, %v644, 0
      %v673 = vsel %vm662, %v645, 0
      %v676 = vsel %vm662, %v646, 0
      %678 = vmatprep.subr.mxu0 0.0
      %679 = vmatpush1.msra.mxu0 %v647
      %680 = vmatprep.subr.mxu0 0.0
      %681 = vmatpush1.msra.mxu0 %v648
      %682 = vmatprep.subr.mxu0 0.0
      %683 = vmatpush1.msra.mxu0 %v649
      %684 = vmatprep.subr.mxu0 0.0
      %685 = vmatpush1.msra.mxu0 %v650
      %686 = vmatprep.subr.mxu0 0.0
      %687 = vmatpush1.msra.mxu0 %v651
      %688 = vmatprep.subr.mxu0 0.0
      %689 = vmatpush1.msra.mxu0 %v652
      %690 = vmatprep.subr.mxu0 0.0
      %691 = vmatpush1.msra.mxu0 %v653
      %692 = vmatprep.subr.mxu0 0.0
      %693 = vmatpush1.msra.mxu0 %v654
      %694 = vmatprep.subr.mxu0 0.0
      %695 = vmatpush1.msra.mxu0 0.0
      %696 = vmatprep.subr.mxu0 0.0
      %697 = vmatpush1.msra.mxu0 0.0
      %698 = vmatprep.subr.mxu0 0.0
      %699 = vmatpush1.msra.mxu0 0.0
      %700 = vmatprep.subr.mxu0 0.0
      %701 = vmatpush1.msra.mxu0 0.0
      %702 = vmatprep.subr.mxu0 0.0
      %703 = vmatpush1.msra.mxu0 0.0
      %704 = vmatprep.subr.mxu0 0.0
      %705 = vmatpush1.msra.mxu0 0.0
      %706 = vmatprep.subr.mxu0 0.0
      %707 = vmatpush1.msra.mxu0 0.0
      %708 = vmatprep.subr.mxu0 0.0
      %709 = vmatpush1.msra.mxu0 0.0
      %710 = vmatprep.subr.mxu0 0.0
      %711 = vmatpush1.msra.mxu0 0.0
      %712 = vmatprep.subr.mxu0 0.0
      %713 = vmatpush1.msra.mxu0 0.0
      %714 = vmatprep.subr.mxu0 0.0
      %715 = vmatpush1.msra.mxu0 0.0
      %716 = vmatprep.subr.mxu0 0.0
      %717 = vmatpush1.msra.mxu0 0.0
      %718 = vmatprep.subr.mxu0 0.0
      %719 = vmatpush1.msra.mxu0 0.0
      %720 = vmatprep.subr.mxu0 0.0
      %721 = vmatpush1.msra.mxu0 0.0
      %722 = vmatprep.subr.mxu0 0.0
      %723 = vmatpush1.msra.mxu0 0.0
      %724 = vmatprep.subr.mxu0 0.0
      %725 = vmatpush1.msra.mxu0 0.0
      %726 = vmatprep.subr.mxu0 0.0
      %727 = vmatpush1.msra.mxu0 0.0
      %728 = vmatprep.subr.mxu0 0.0
      %729 = vmatpush1.msra.mxu0 0.0
      %730 = vmatprep.subr.mxu0 0.0
      %731 = vmatpush1.msra.mxu0 0.0
      %732 = vmatprep.subr.mxu0 0.0
      %733 = vmatpush1.msra.mxu0 0.0
      %734 = vmatprep.subr.mxu0 0.0
      %735 = vmatpush1.msra.mxu0 0.0
      %736 = vmatprep.subr.mxu0 0.0
      %737 = vmatpush1.msra.mxu0 0.0
      %738 = vmatprep.subr.mxu0 0.0
      %739 = vmatpush1.msra.mxu0 0.0
      %740 = vmatprep.subr.mxu0 0.0
      %741 = vmatpush1.msra.mxu0 0.0
      %742 = vmatprep.mubr.f32.mxu0 0.0
      %743 = vmatmul.mubr.f32.gmra.mrb[0].mxu0 %v664
      %v744 = vpop.f32.mrb[0].mxu0
      %v745 = vadd.f32 %v660, %v744
      %v746 = vpop.f32.mrb[0].mxu0
      %747 = vmatprep.mubr.f32.mxu0 0.0
      %748 = vmatmul.mubr.f32.gmra.mrb[0].mxu0 %v667
      %v749 = vpop.f32.mrb[0].mxu0
      %v750 = vadd.f32 %v660, %v749
      %v751 = vpop.f32.mrb[0].mxu0
      %752 = vmatprep.mubr.f32.mxu0 0.0
      %753 = vmatmul.mubr.f32.gmra.mrb[0].mxu0 %v670
      %v754 = vpop.f32.mrb[0].mxu0
      %v755 = vadd.f32 %v660, %v754
      %v756 = vpop.f32.mrb[0].mxu0
      %757 = vmatprep.mubr.f32.mxu0 0.0
      %758 = vmatmul.mubr.f32.gmra.mrb[0].mxu0 %v673
      %v759 = vpop.f32.mrb[0].mxu0
      %v760 = vadd.f32 %v660, %v759
      %v761 = vpop.f32.mrb[0].mxu0
      %762 = vmatprep.mubr.f32.mxu0 0.0
      %763 = vmatmul.mubr.f32.gmra.mrb[0].mxu0 %v676
      %v764 = vpop.f32.mrb[0].mxu0
      %v765 = vadd.f32 %v660, %v764
      %v766 = vpop.f32.mrb[0].mxu0
      %767 = vdwg.mxu0
      %v768 = vmax.f32 %v745, 0.0
      %v769 = vmax.f32 %v750, 0.0
      %v770 = vmax.f32 %v755, 0.0
      %v771 = vmax.f32 %v760, 0.0
      %v772 = vmax.f32 %v765, 0.0
      %v773 = vld [vmem:[%s5] sm:$0xff]
      %v774 = vld [vmem:[%s5 + $0x8] sm:$0xff]
      %v775 = vld [vmem:[%s5 + $0x10] sm:$0xff]
      %v776 = vld [vmem:[%s5 + $0x18] sm:$0xff]
      %v777 = vld [vmem:[%s5 + $0x20] sm:$0xf]
      %v778 = vmul.f32 %v768, %v773
      %v779 = vmul.f32 %v769, %v774
      %v780 = vmul.f32 %v770, %v775
      %v781 = vmul.f32 %v771, %v776
      %v782 = vmul.f32 %v772, %v777
      %v783 = vlaneseq
      %v784 = vand.u32 %v783, 127
      %v785 = vlaneseq
      %v786 = vshrl.u32 %v785, 7
      %v787 = vmul.u32 %v786, 36
      %vm788 = vcmp.ge.s32.totalorder %v784, %v787
      %v789 = vadd.s32 %v787, 36
      %vm790 = vcmp.lt.s32.totalorder %v784, %v789
      %vm791 = vmand %vm788, %vm790
      %v792 = vsel %vm791, 1, 0
      %v793 = vcvt.s32.f32 %v792
      %vm794 = vcmask 293888
      %v796 = vsel %vm794, %v793, 0
      %vm798 = vcmask 1043456
      %v800 = vsel %vm798, %v782, 0
      %802 = vmatprep.subr.mxu0 0.0
      %803 = vmatpush1.msra.mxu0 %v778
      %804 = vmatprep.subr.mxu0 0.0
      %805 = vmatpush1.msra.mxu0 %v779
      %806 = vmatprep.subr.mxu0 0.0
      %807 = vmatpush1.msra.mxu0 %v780
      %808 = vmatprep.subr.mxu0 0.0
      %809 = vmatpush1.msra.mxu0 %v781
      %810 = vmatprep.subr.mxu0 0.0
      %811 = vmatpush1.msra.mxu0 %v800
      %812 = vmatprep.subr.mxu0 0.0
      %813 = vmatpush1.msra.mxu0 0.0
      %814 = vmatprep.subr.mxu0 0.0
      %815 = vmatpush1.msra.mxu0 0.0
      %816 = vmatprep.subr.mxu0 0.0
      %817 = vmatpush1.msra.mxu0 0.0
      %818 = vmatprep.subr.mxu0 0.0
      %819 = vmatpush1.msra.mxu0 0.0
      %820 = vmatprep.subr.mxu0 0.0
      %821 = vmatpush1.msra.mxu0 0.0
      %822 = vmatprep.subr.mxu0 0.0
      %823 = vmatpush1.msra.mxu0 0.0
      %824 = vmatprep.subr.mxu0 0.0
      %825 = vmatpush1.msra.mxu0 0.0
      %826 = vmatprep.subr.mxu0 0.0
      %827 = vmatpush1.msra.mxu0 0.0
      %828 = vmatprep.subr.mxu0 0.0
      %829 = vmatpush1.msra.mxu0 0.0
      %830 = vmatprep.subr.mxu0 0.0
      %831 = vmatpush1.msra.mxu0 0.0
      %832 = vmatprep.subr.mxu0 0.0
      %833 = vmatpush1.msra.mxu0 0.0
      %834 = vmatprep.subr.mxu0 0.0
      %835 = vmatpush1.msra.mxu0 0.0
      %836 = vmatprep.subr.mxu0 0.0
      %837 = vmatpush1.msra.mxu0 0.0
      %838 = vmatprep.subr.mxu0 0.0
      %839 = vmatpush1.msra.mxu0 0.0
      %840 = vmatprep.subr.mxu0 0.0
      %841 = vmatpush1.msra.mxu0 0.0
      %842 = vmatprep.subr.mxu0 0.0
      %843 = vmatpush1.msra.mxu0 0.0
      %844 = vmatprep.subr.mxu0 0.0
      %845 = vmatpush1.msra.mxu0 0.0
      %846 = vmatprep.subr.mxu0 0.0
      %847 = vmatpush1.msra.mxu0 0.0
      %848 = vmatprep.subr.mxu0 0.0
      %849 = vmatpush1.msra.mxu0 0.0
      %850 = vmatprep.subr.mxu0 0.0
      %851 = vmatpush1.msra.mxu0 0.0
      %852 = vmatprep.subr.mxu0 0.0
      %853 = vmatpush1.msra.mxu0 0.0
      %854 = vmatprep.subr.mxu0 0.0
      %855 = vmatpush1.msra.mxu0 0.0
      %856 = vmatprep.subr.mxu0 0.0
      %857 = vmatpush1.msra.mxu0 0.0
      %858 = vmatprep.subr.mxu0 0.0
      %859 = vmatpush1.msra.mxu0 0.0
      %860 = vmatprep.subr.mxu0 0.0
      %861 = vmatpush1.msra.mxu0 0.0
      %862 = vmatprep.subr.mxu0 0.0
      %863 = vmatpush1.msra.mxu0 0.0
      %864 = vmatprep.subr.mxu0 0.0
      %865 = vmatpush1.msra.mxu0 0.0
      %866 = vmatprep.mubr.f32.mxu0 0.0
      %867 = vmatmul.mubr.f32.gmra.mrb[0].mxu0 %v796
      %v868 = vpop.f32.mrb[0].mxu0
      %v869 = vadd.f32 0.0, %v868
      %v870 = vpop.f32.mrb[0].mxu0
      %871 = vdwg.mxu0
      %vm872 = vcmask 122880
      %v873 = vsel %vm872, %v869, 0.0
      %874 = vadd.xlane.f32.xlu0 %v873
      %v875 = vpop.xlane.xlu0 %874
      %s876 = sld [smem:[#allocation4]]
      %v877 = vstv %s876
      %v878 = vadd.f32 %v875, %v877
      %vm879 = vcmask 0
      %880 = vst.msk [vmem:[%s275] sm:$0x1] %vm879, %v878
      %p881 = scmp.lt.s32.totalorder %s19, 1
      %s882 = scalar_select %p881, %s19, 1
      %s883 = scalar_lea.vmem %s7, %s882
      // Predicated region
      $region49: #{bloc_out_no_bn_forward.1} parent=47 // pred_check
        %p884 = pneg %p189
      $region50: #{bloc_out_no_bn_forward.1} parent=47 // pred_check_branch
        %886 = sbr.rel (%p884) target = $region52
      $region51: #{bloc_out_no_bn_forward.1} parent=47 // pred_region
        _
      $region52: #{bloc_out_no_bn_forward.1} parent=47 // pred_fallthru
        _
    $region48: #{bloc_out_no_bn_forward.1} parent=5 // pred_fallthru
      _
    %p887 = scmp.le.s32.totalorder 2, %s14
    // Predicated region
    $region53: #{bloc_out_no_bn_forward.1} parent=5 // pred_check
      %p888 = pneg %p887
    $region54: #{bloc_out_no_bn_forward.1} parent=5 // pred_check_branch
      %890 = sbr.rel (%p888) target = $region56
    $region55: #{bloc_out_no_bn_forward.1} parent=5 // pred_region
      %s891 = ssub.s32 %s14, 2
      // Predicated region
      $region57: #{bloc_out_no_bn_forward.1} parent=55 // pred_check
        %p892 = pneg %p195
      $region58: #{bloc_out_no_bn_forward.1} parent=55 // pred_check_branch
        %894 = sbr.rel (%p892) target = $region60
      $region59: #{bloc_out_no_bn_forward.1} parent=55 // pred_region
        %p895 = scmp.lt.s32.totalorder %s20, 1
        %s896 = scalar_select %p895, %s20, 1
        %s897 = scalar_lea.vmem %s7, %s896
      $region60: #{bloc_out_no_bn_forward.1} parent=55 // pred_fallthru
        _
    $region56: #{bloc_out_no_bn_forward.1} parent=5 // pred_fallthru
      _
  $region6: #{bloc_out_no_bn_forward.1} parent=0 // loop_footer
    %s18 = sadd.s32 1, %s14
  $region7: #{bloc_out_no_bn_forward.1} parent=0 // loop_footer_branch
    %13 = sbr.rel target = $region3
  $region8: #{bloc_out_no_bn_forward.1} parent=0 // loop_exit
    _

</llo_original>
